<compile_context>
chip_gen: v5e
topology: v5e:2x2
jax: 0.10.0
libtpu: 0.0.40
codegen_flags: <defaults>
</compile_context>

<pallas_src>
import functools

import jax
import jax.numpy as jnp
from jax.experimental import pallas as pl
from jax.experimental.pallas import tpu as pltpu


def _hybrid_kernel(x_ref, tbl_ref, misc_ref, out_ref, *, row_offsets, r_lo, r_hi):
    """Fused (embedding+fc1) row select + sum + ReLU + fc2 + sigmoid rescale.

    x_ref    : VMEM (B, 4) int32   [user, podcast, genre, producer] ids
    tbl_ref  : VMEM (N_total, H) f32  fused table: table_f @ W1[rows_f]
    misc_ref : VMEM (3, H) f32     row0 = b1, row1 = fc2 weight row, row2 = b2
    out_ref  : VMEM (B, 1) f32
    """
    b = out_ref.shape[0]
    n_total = tbl_ref.shape[0]

    ids = x_ref[...]                                              # (B, 4) int32

    # --- vectorized gather: one-hot over the fused table's global row index --
    lane = jax.lax.broadcasted_iota(jnp.int32, (b, n_total), 1)   # (B, N_total)
    onehot = jnp.zeros((b, n_total), jnp.float32)
    for f, off in enumerate(row_offsets):                         # 4 static iters
        onehot = onehot + (lane == ids[:, f:f + 1] + off).astype(jnp.float32)
    # TODO(synk): nn.Embedding raises on out-of-range ids; here an out-of-range
    # id selects nothing (or another field's row) — memory-safe but silent.

    # --- gather + sum-over-fields + fc1 in one tiny MXU pass, + b1, ReLU -----
    h = jnp.dot(onehot, tbl_ref[...], preferred_element_type=jnp.float32)  # (B, H)
    h = jnp.maximum(h + misc_ref[0:1, :], 0.0)

    # --- fc2 as VPU multiply + cross-lane reduce (no 1/128-occupied MXU) -----
    o = jnp.sum(h * misc_ref[1:2, :], axis=-1, keepdims=True) + misc_ref[2:3, 0:1]

    # --- sigmoid + rating-range rescale --------------------------------------
    o = jax.nn.sigmoid(o) * (r_hi - r_lo) + r_lo

    # (B, 1) is a single masked store at B=8; go lane-dense if B scales.
    out_ref[...] = o.astype(out_ref.dtype)


def precompute_fused_params(params):
    """Fold fc1 into the embedding tables (valid because fc1 is linear in the
    concatenated embedding) and pack the small per-call constants.

    Do this once per weight update; repeated forward calls then DMA only the
    fused table (~N_total*H*4 B) + the (3, H) misc buffer + X."""
    w1 = params["w1"].astype(jnp.float32)                         # (D_total, H)
    h = w1.shape[1]
    tables = (params["user_emb"], params["podcast_emb"],
              params["genre_emb"], params["producer_emb"])
    fused_rows, row_offsets = [], []
    d0, n0 = 0, 0
    for t in tables:
        d = t.shape[1]
        fused_rows.append(t.astype(jnp.float32) @ w1[d0:d0 + d, :])
        row_offsets.append(n0)
        d0 += d
        n0 += t.shape[0]
    fused_table = jnp.concatenate(fused_rows, axis=0)             # (N_total, H)
    misc = jnp.concatenate([
        params["b1"].reshape(1, h).astype(jnp.float32),                         # b1
        params["w2"].reshape(1, h).astype(jnp.float32),                         # fc2 weight row
        jnp.broadcast_to(params["b2"].reshape(1, 1).astype(jnp.float32), (1, h)),  # b2
    ], axis=0)                                                    # (3, H)
    return {"fused_table": fused_table, "misc": misc,
            "row_offsets": tuple(int(o) for o in row_offsets)}


def nn_hybrid_filtering_forward(X, fused, rating_range):
    """Forward pass matching NNHybridFiltering.forward.  X: (B, 4) int -> (B, 1) f32."""
    b = X.shape[0]
    r_lo, r_hi = float(rating_range[0]), float(rating_range[1])
    kernel = functools.partial(_hybrid_kernel,
                               row_offsets=fused["row_offsets"],
                               r_lo=r_lo, r_hi=r_hi)
    vmem = pl.BlockSpec(memory_space=pltpu.MemorySpace.VMEM)
    return pl.pallas_call(
        kernel,
        out_shape=jax.ShapeDtypeStruct((b, 1), jnp.float32),
        in_specs=[vmem, vmem, vmem],
        out_specs=vmem,
    )(X.astype(jnp.int32), fused["fused_table"], fused["misc"])


def init_params(key, n_users, n_podcasts, n_genres, n_producers,
                embdim_users, embdim_podcasts, embdim_genres, embdim_producers,
                n_activations):
    """Deterministic synthetic parameter init (shapes match the PyTorch module)."""
    ks = jax.random.split(key, 8)
    d_total = embdim_users + embdim_podcasts + embdim_genres + embdim_producers
    params = {
        "user_emb": jax.random.normal(ks[0], (n_users, embdim_users), jnp.float32),
        "podcast_emb": jax.random.normal(ks[1], (n_podcasts, embdim_podcasts), jnp.float32),
        "genre_emb": jax.random.normal(ks[2], (n_genres, embdim_genres), jnp.float32),
        "producer_emb": jax.random.normal(ks[3], (n_producers, embdim_producers), jnp.float32),
        # fc1 weight stored pre-transposed relative to torch.nn.Linear.weight: (in, out)
        "w1": jax.random.normal(ks[4], (d_total, n_activations), jnp.float32)
              * (1.0 / jnp.sqrt(d_total)),
        "b1": jax.random.normal(ks[5], (1, n_activations), jnp.float32) * 0.01,
        # fc2 weight stored as a ROW (1, H).
        "w2": jax.random.normal(ks[6], (1, n_activations), jnp.float32)
              * (1.0 / jnp.sqrt(n_activations)),
        "b2": jax.random.normal(ks[7], (1, 1), jnp.float32) * 0.01,
    }
    return params


def _reference_forward(X, params, rating_range):
    """Pure-JAX reference matching the PyTorch module, for correctness checking."""
    emb_u = jnp.take(params["user_emb"], X[:, 0], axis=0)
    emb_p = jnp.take(params["podcast_emb"], X[:, 1], axis=0)
    emb_g = jnp.take(params["genre_emb"], X[:, 2], axis=0)
    emb_r = jnp.take(params["producer_emb"], X[:, 3], axis=0)
    emb = jnp.concatenate([emb_u, emb_p, emb_g, emb_r], axis=1).astype(jnp.float32)
    h = jnp.maximum(emb @ params["w1"] + params["b1"], 0.0)
    o = h @ params["w2"].T + params["b2"]
    r_lo, r_hi = float(rating_range[0]), float(rating_range[1])
    return jax.nn.sigmoid(o) * (r_hi - r_lo) + r_lo


if __name__ == "__main__":
    # Small, module-consistent shapes.
    n_users, n_podcasts, n_genres, n_producers = 50, 40, 10, 12
    embdim_users, embdim_podcasts, embdim_genres, embdim_producers = 8, 8, 4, 4
    n_activations = 32
    rating_range = (1.0, 5.0)
    batch = 8

    key = jax.random.PRNGKey(0)
    k_param, k_x = jax.random.split(key)
    params = init_params(k_param, n_users, n_podcasts, n_genres, n_producers,
                         embdim_users, embdim_podcasts, embdim_genres,
                         embdim_producers, n_activations)

    # X: (B, 4) int32 categorical indices [user, podcast, genre, producer]
    kx = jax.random.split(k_x, 4)
    X = jnp.stack([
        jax.random.randint(kx[0], (batch,), 0, n_users),
        jax.random.randint(kx[1], (batch,), 0, n_podcasts),
        jax.random.randint(kx[2], (batch,), 0, n_genres),
        jax.random.randint(kx[3], (batch,), 0, n_producers),
    ], axis=1).astype(jnp.int32)

    # One-time fold of fc1 into the embedding tables + param packing.
    fused = precompute_fused_params(params)
    fused = jax.tree_util.tree_map(
        lambda x: jax.block_until_ready(x) if isinstance(x, jax.Array) else x, fused)

    preds = nn_hybrid_filtering_forward(X, fused, rating_range)
    preds = jax.block_until_ready(preds)

    ref = jax.block_until_ready(_reference_forward(X, params, rating_range))

    assert preds.shape == (batch, 1)
    assert bool(jnp.all(preds >= rating_range[0])) and bool(jnp.all(preds <= rating_range[1]))
    assert bool(jnp.allclose(preds, ref, rtol=1e-5, atol=1e-5))
    print("KERNEL_OK")
</pallas_src>

<mosaic_0001>
module attributes {stable_mosaic.version = 11 : i64} {
  func.func @_hybrid_kernel(%arg0: memref<8x4xi32, #tpu.memory_space<vmem>>, %arg1: memref<112x32xf32, #tpu.memory_space<vmem>>, %arg2: memref<3x32xf32, #tpu.memory_space<vmem>>, %arg3: memref<8x1xf32, #tpu.memory_space<vmem>>) attributes {dimension_semantics = [], scalar_prefetch = 0 : i64, scratch_operands = 0 : i64, tpu.core_type = #tpu.core_type<tc>} {
    %c0 = arith.constant 0 : index
    %c0_0 = arith.constant 0 : index
    %0 = vector.load %arg0[%c0, %c0_0] : memref<8x4xi32, #tpu.memory_space<vmem>>, vector<8x4xi32>
    %1 = tpu.iota {dimensions = array<i32: 1>} : vector<8x112xi32>
    %cst = arith.constant 0.000000e+00 : f32
    %2 = vector.broadcast %cst : f32 to vector<8x112xf32>
    %3 = vector.extract_strided_slice %0 {offsets = [0, 0], sizes = [8, 1], strides = [1, 1]} : vector<8x4xi32> to vector<8x1xi32>
    %c0_i32 = arith.constant 0 : i32
    %4 = vector.broadcast %c0_i32 : i32 to vector<8x1xi32>
    %5 = arith.addi %3, %4 : vector<8x1xi32>
    %6 = vector.broadcast %5 : vector<8x1xi32> to vector<8x112xi32>
    %7 = arith.cmpi eq, %1, %6 : vector<8x112xi32>
    %8 = arith.extui %7 : vector<8x112xi1> to vector<8x112xi32>
    %9 = arith.sitofp %8 : vector<8x112xi32> to vector<8x112xf32>
    %10 = arith.addf %2, %9 : vector<8x112xf32>
    %11 = vector.extract_strided_slice %0 {offsets = [0, 1], sizes = [8, 1], strides = [1, 1]} : vector<8x4xi32> to vector<8x1xi32>
    %c50_i32 = arith.constant 50 : i32
    %12 = vector.broadcast %c50_i32 : i32 to vector<8x1xi32>
    %13 = arith.addi %11, %12 : vector<8x1xi32>
    %14 = vector.broadcast %13 : vector<8x1xi32> to vector<8x112xi32>
    %15 = arith.cmpi eq, %1, %14 : vector<8x112xi32>
    %16 = arith.extui %15 : vector<8x112xi1> to vector<8x112xi32>
    %17 = arith.sitofp %16 : vector<8x112xi32> to vector<8x112xf32>
    %18 = arith.addf %10, %17 : vector<8x112xf32>
    %19 = vector.extract_strided_slice %0 {offsets = [0, 2], sizes = [8, 1], strides = [1, 1]} : vector<8x4xi32> to vector<8x1xi32>
    %c90_i32 = arith.constant 90 : i32
    %20 = vector.broadcast %c90_i32 : i32 to vector<8x1xi32>
    %21 = arith.addi %19, %20 : vector<8x1xi32>
    %22 = vector.broadcast %21 : vector<8x1xi32> to vector<8x112xi32>
    %23 = arith.cmpi eq, %1, %22 : vector<8x112xi32>
    %24 = arith.extui %23 : vector<8x112xi1> to vector<8x112xi32>
    %25 = arith.sitofp %24 : vector<8x112xi32> to vector<8x112xf32>
    %26 = arith.addf %18, %25 : vector<8x112xf32>
    %27 = vector.extract_strided_slice %0 {offsets = [0, 3], sizes = [8, 1], strides = [1, 1]} : vector<8x4xi32> to vector<8x1xi32>
    %c100_i32 = arith.constant 100 : i32
    %28 = vector.broadcast %c100_i32 : i32 to vector<8x1xi32>
    %29 = arith.addi %27, %28 : vector<8x1xi32>
    %30 = vector.broadcast %29 : vector<8x1xi32> to vector<8x112xi32>
    %31 = arith.cmpi eq, %1, %30 : vector<8x112xi32>
    %32 = arith.extui %31 : vector<8x112xi1> to vector<8x112xi32>
    %33 = arith.sitofp %32 : vector<8x112xi32> to vector<8x112xf32>
    %34 = arith.addf %26, %33 : vector<8x112xf32>
    %c0_1 = arith.constant 0 : index
    %c0_2 = arith.constant 0 : index
    %35 = vector.load %arg1[%c0_1, %c0_2] : memref<112x32xf32, #tpu.memory_space<vmem>>, vector<112x32xf32>
    %cst_3 = arith.constant dense<0.000000e+00> : vector<8x32xf32>
    %36 = tpu.matmul %34, %35, %cst_3 {dimension_numbers = #tpu.dot_dimension_numbers<[1], [0], [0], [1], [0, 0, 1, 1], [], []>} : vector<8x112xf32>, vector<112x32xf32>, vector<8x32xf32> -> vector<8x32xf32>
    %c0_4 = arith.constant 0 : index
    %c0_5 = arith.constant 0 : index
    %37 = vector.load %arg2[%c0_4, %c0_5] : memref<3x32xf32, #tpu.memory_space<vmem>>, vector<1x32xf32>
    %38 = vector.broadcast %37 : vector<1x32xf32> to vector<8x32xf32>
    %39 = arith.addf %36, %38 : vector<8x32xf32>
    %cst_6 = arith.constant 0.000000e+00 : f32
    %40 = vector.broadcast %cst_6 : f32 to vector<8x32xf32>
    %41 = arith.maximumf %39, %40 : vector<8x32xf32>
    %c1 = arith.constant 1 : index
    %c0_7 = arith.constant 0 : index
    %42 = vector.load %arg2[%c1, %c0_7] : memref<3x32xf32, #tpu.memory_space<vmem>>, vector<1x32xf32>
    %43 = vector.broadcast %42 : vector<1x32xf32> to vector<8x32xf32>
    %44 = arith.mulf %41, %43 : vector<8x32xf32>
    %cst_8 = arith.constant dense<0.000000e+00> : vector<8xf32>
    %45 = vector.multi_reduction <add>, %44, %cst_8 [1] : vector<8x32xf32> to vector<8xf32>
    %46 = vector.shape_cast %45 : vector<8xf32> to vector<8x1xf32>
    %c2 = arith.constant 2 : index
    %c0_9 = arith.constant 0 : index
    %47 = vector.load %arg2[%c2, %c0_9] : memref<3x32xf32, #tpu.memory_space<vmem>>, vector<1x1xf32>
    %48 = vector.broadcast %47 : vector<1x1xf32> to vector<8x1xf32>
    %49 = arith.addf %46, %48 : vector<8x1xf32>
    %50 = arith.negf %49 : vector<8x1xf32>
    %51 = math.exp %50 : vector<8x1xf32>
    %cst_10 = arith.constant 1.000000e+00 : f32
    %52 = vector.broadcast %cst_10 : f32 to vector<8x1xf32>
    %53 = arith.addf %52, %51 : vector<8x1xf32>
    %54 = arith.divf %52, %53 : vector<8x1xf32>
    %cst_11 = arith.constant 4.000000e+00 : f32
    %55 = vector.broadcast %cst_11 : f32 to vector<8x1xf32>
    %56 = arith.mulf %54, %55 : vector<8x1xf32>
    %cst_12 = arith.constant 1.000000e+00 : f32
    %57 = vector.broadcast %cst_12 : f32 to vector<8x1xf32>
    %58 = arith.addf %56, %57 : vector<8x1xf32>
    %c0_13 = arith.constant 0 : index
    %c0_14 = arith.constant 0 : index
    %59 = vector.load %arg3[%c0_13, %c0_14] : memref<8x1xf32, #tpu.memory_space<vmem>>, vector<8x1xf32>
    tpu.vector_store %arg3[%c0_13, %c0_14], %58 {strides = array<i32>} : memref<8x1xf32, #tpu.memory_space<vmem>>, vector<8x1xf32>,
    return
  }
}

</mosaic_0001>

<llo_original>
// kernel: tpu_custom_call.1
$region0: #{tpu_custom_call.1}
  #allocation0 [shape = 'u32[]', space=smem, size = 0x4, offset = 0x4, fixed_abs, tag = 'smem constant byte address 0x4 - core index']
  #allocation1 [shape = 'u32[72,128]{1,0:T(1,128)}', space=vmem, size = 0x9000, scoped, tag = 'internal scratch']
  %s0 = inlined_call_operand.vmem [shape: s32[8,4], index: 0, kind: input, shape index: {}]
  %s1 = inlined_call_operand.vmem [shape: f32[112,32], index: 1, kind: input, shape index: {}]
  %s2 = inlined_call_operand.vmem [shape: f32[3,32], index: 2, kind: input, shape index: {}]
  %s3 = inlined_call_operand.vmem [shape: f32[8,1], index: 3, kind: output, shape index: {}]
  %s4 = sld [smem:[#allocation0]]
  $region22: #{tpu_custom_call.1} parent=0
    _
  %s6 = ssub.s32 1, %s4
  %s7 = scalar_select 0, %s6, %s4
  // Predicated region
  $region2: #{tpu_custom_call.1} parent=0 // pred_check
    _
  $region3: #{tpu_custom_call.1} parent=0 // pred_check_branch
    %9 = sbr.rel (0) target = $region5
  $region4: #{tpu_custom_call.1} parent=0 // pred_region
    _
  $region5: #{tpu_custom_call.1} parent=0 // pred_fallthru
    _
  // Predicated region
  $region6: #{tpu_custom_call.1} parent=0 // pred_check
    _
  $region7: #{tpu_custom_call.1} parent=0 // pred_check_branch
    %11 = sbr.rel (0) target = $region9
  $region8: #{tpu_custom_call.1} parent=0 // pred_region
    _
  $region9: #{tpu_custom_call.1} parent=0 // pred_fallthru
    _
  // Predicated region
  $region10: #{tpu_custom_call.1} parent=0 // pred_check
    _
  $region11: #{tpu_custom_call.1} parent=0 // pred_check_branch
    %13 = sbr.rel (0) target = $region13
  $region12: #{tpu_custom_call.1} parent=0 // pred_region
    _
  $region13: #{tpu_custom_call.1} parent=0 // pred_fallthru
    _
  %v14 = vld [vmem:[%s0] sm:$0xff]
  %v15 = vlaneseq
  %v16 = vand.u32 %v15, 127
  %17 = vset.pattern.permute.xlu0 0
  %18 = vperm.xlu0 %17, %v14
  %v19 = vpop.permute.xlu0 %18
  %vm20 = vcmp.eq.s32.totalorder %v16, %v19
  %v21 = vsel %vm20, 1, 0
  %v22 = vcvt.s32.f32 %v21
  %v23 = vadd.f32 %v22, 0.0
  %v24 = vadd.s32 %v14, 50
  %25 = vset.pattern.permute.xlu0 1
  %26 = vperm.xlu0 %25, %v24
  %v27 = vpop.permute.xlu0 %26
  %vm28 = vcmp.eq.s32.totalorder %v16, %v27
  %v29 = vsel %vm28, 1, 0
  %v30 = vcvt.s32.f32 %v29
  %v31 = vadd.f32 %v23, %v30
  %v32 = vadd.s32 %v14, 90
  %33 = vset.pattern.permute.xlu0 2
  %34 = vperm.xlu0 %33, %v32
  %v35 = vpop.permute.xlu0 %34
  %vm36 = vcmp.eq.s32.totalorder %v16, %v35
  %v37 = vsel %vm36, 1, 0
  %v38 = vcvt.s32.f32 %v37
  %v39 = vadd.f32 %v31, %v38
  %v40 = vadd.s32 %v14, 100
  %41 = vset.pattern.permute.xlu0 3
  %42 = vperm.xlu0 %41, %v40
  %v43 = vpop.permute.xlu0 %42
  %vm44 = vcmp.eq.s32.totalorder %v16, %v43
  %v45 = vsel %vm44, 1, 0
  %v46 = vcvt.s32.f32 %v45
  %v47 = vadd.f32 %v39, %v46
  %v48 = vld [vmem:[%s1] sm:$0xff]
  %v49 = vld [vmem:[%s1 + $0x8] sm:$0xff]
  %v50 = vld [vmem:[%s1 + $0x10] sm:$0xff]
  %v51 = vld [vmem:[%s1 + $0x18] sm:$0xff]
  %v52 = vld [vmem:[%s1 + $0x20] sm:$0xff]
  %v53 = vld [vmem:[%s1 + $0x28] sm:$0xff]
  %v54 = vld [vmem:[%s1 + $0x30] sm:$0xff]
  %v55 = vld [vmem:[%s1 + $0x38] sm:$0xff]
  %v56 = vld [vmem:[%s1 + $0x40] sm:$0xff]
  %v57 = vld [vmem:[%s1 + $0x48] sm:$0xff]
  %v58 = vld [vmem:[%s1 + $0x50] sm:$0xff]
  %v59 = vld [vmem:[%s1 + $0x58] sm:$0xff]
  %v60 = vld [vmem:[%s1 + $0x60] sm:$0xff]
  %v61 = vld [vmem:[%s1 + $0x68] sm:$0xff]
  %v62 = vld [vmem:[%s2] sm:$0x1]
  %v63 = vperm.slane %v62, 0
  %vm64 = vcmask 916480
  %v66 = vsel %vm64, %v47, 0
  %68 = vmatpush.msra.mxu0 0.0
  %69 = vmatpush.msra.mxu0 0.0
  %70 = vmatpush.msra.mxu0 %v61
  %71 = vmatpush.msra.mxu0 %v60
  %72 = vmatpush.msra.mxu0 %v59
  %73 = vmatpush.msra.mxu0 %v58
  %74 = vmatpush.msra.mxu0 %v57
  %75 = vmatpush.msra.mxu0 %v56
  %76 = vmatpush.msra.mxu0 %v55
  %77 = vmatpush.msra.mxu0 %v54
  %78 = vmatpush.msra.mxu0 %v53
  %79 = vmatpush.msra.mxu0 %v52
  %80 = vmatpush.msra.mxu0 %v51
  %81 = vmatpush.msra.mxu0 %v50
  %82 = vmatpush.msra.mxu0 %v49
  %83 = vmatpush.msra.mxu0 %v48
  %84 = vmatmul.f32.gmra.mxu0 %v66
  %v85 = vpop.f32.mrf.mxu0
  %v86 = vadd.f32 %v63, %v85
  %87 = vdwg.mxu0
  %v88 = vmax.f32 %v86, 0.0
  %v89 = vld [vmem:[%s2 + $0x1] sm:$0x1]
  %v90 = vperm.slane %v89, 0
  %v91 = vmul.f32 %v88, %v90
  %vm92 = vcmask 261120
  %v93 = vsel %vm92, %v91, 0.0
  %94 = vadd.xlane.f32.xlu0 %v93
  %v95 = vpop.xlane.xlu0 %94
  %v96 = vld [vmem:[%s2 + $0x2] sm:$0x1]
  %v97 = vperm.slane %v96, 0
  %v98 = vadd.f32 %v95, %v97
  %v99 = vxor.u32 %v98, 2147483648
  %v100 = vmul.f32 %v99, 1.442695
  %v101 = vpow.pop %v100
  %v102 = vadd.f32 %v101, 1.0
  %v103 = vrcp.pop %v102
  %v104 = vmul.f32 %v102, %v103
  %v105 = vsub.f32 1.0, %v104
  %v106 = vmul.f32 %v103, %v105
  %v107 = vadd.f32 %v103, %v106
  %vm108 = vweird.f32 %v102
  %vm109 = vweird.f32 %v103
  %vm110 = vmor %vm108, %vm109
  %v111 = vsel %vm110, %v103, %v107
  %v112 = vand.u32 2147483647, %v102
  %vm113 = vcmp.eq.f32.partialorder %v112, 8.507059e+37
  %v114 = vand.u32 %v102, 2147483648
  %v115 = vor.u32 1.1754944e-38, %v114
  %v116 = vsel %vm113, %v115, %v111
  %v117 = vmul.f32 1.0, %v116
  %v118 = vmul.f32 %v117, 4.0
  %v119 = vadd.f32 %v118, 1.0
  %vm120 = vcmask 7168
  %121 = vst.msk [vmem:[%s3] sm:$0xff] %vm120, %v119
  // Predicated region
  $region14: #{tpu_custom_call.1} parent=0 // pred_check
    _
  $region15: #{tpu_custom_call.1} parent=0 // pred_check_branch
    %123 = sbr.rel (0) target = $region17
  $region16: #{tpu_custom_call.1} parent=0 // pred_region
    _
  $region17: #{tpu_custom_call.1} parent=0 // pred_fallthru
    _
  // Predicated region
  $region18: #{tpu_custom_call.1} parent=0 // pred_check
    _
  $region19: #{tpu_custom_call.1} parent=0 // pred_check_branch
    %125 = sbr.rel (0) target = $region21
  $region20: #{tpu_custom_call.1} parent=0 // pred_region
    _
  $region21: #{tpu_custom_call.1} parent=0 // pred_fallthru
    _

</llo_original>
